<compile_context>
chip_gen: v5e
topology: v5e:2x2
jax: 0.10.0
libtpu: 0.0.40
codegen_flags: <defaults>
</compile_context>

<pallas_src>
import functools
import math

import jax
import jax.numpy as jnp
from jax import lax
from jax.experimental import pallas as pl
from jax.experimental.pallas import tpu as pltpu

# Module hyper-parameters (deterministic, from __init__ defaults).
GAMMA_NEG = 4.0
GAMMA_POS = 1.0
PROB_MARGIN = 0.05
EPS = 1e-8
LOG_EPS = math.log(EPS)
TINY = 1e-30          # clamp for log(base); value-neutral (base == 0 only where loss == 0)

LANES = 128                              # lane-dense last dim (one full vreg width)
TARGET_BLOCK_BYTES = 2 * 1024 * 1024     # ~2 MiB per f32 input block (4096 rows x 128 lanes)
CHUNK_ROWS = 512                         # rows per unrolled inner step (bounds temporaries)
ROW_GRAIN = 16                           # row granularity (covers f32 and packed bf16 tiles)
VMEM_LIMIT_BYTES = 32 * 1024 * 1024      # > v5e 16 MiB scoped default, < v7x 64 MiB physical


def _round_up(v, m):
    return -(-v // m) * m


def _pow_const(x, gamma):
    """x ** gamma for a compile-time constant gamma >= 0.

    Small integer exponents are strength-reduced to VALU multiplies (the EUP is the
    binding unit in this kernel); anything else falls back to exp(gamma * log(x)).
    """
    if gamma == 0.0:
        return jnp.ones_like(x)
    if float(gamma).is_integer() and 1.0 <= gamma <= 8.0:
        n = int(gamma)
        result = None
        base = x
        while n:
            if n & 1:
                result = base if result is None else result * base
            n >>= 1
            if n:
                base = base * base
        return result
    return jnp.exp(gamma * jnp.log(jnp.maximum(x, TINY)))


def _asl_elementwise(x_in, t_in, implementation, hard_labels):
    """Per-element negative asymmetric loss, computed in f32."""
    x = x_in.astype(jnp.float32)
    t = t_in.astype(jnp.float32)
    anti = 1.0 - t

    # Share one exp(-x): sigmoid = 1/(1+e), log(sigmoid) = -log(1+e).
    e = jnp.exp(-x)
    xs_pos = 1.0 / (1.0 + e)
    # == log(clamp(sigmoid(x), min=EPS)); also correct when e overflows to inf.
    log_pos = jnp.maximum(-jnp.log(1.0 + e), LOG_EPS)

    xs_neg = 1.0 - xs_pos        # keep this form: stays exact when e == inf (x << 0)
    if PROB_MARGIN > 0:
        xs_neg = jnp.minimum(xs_neg + PROB_MARGIN, 1.0)
    log_neg = jnp.log(jnp.maximum(xs_neg, EPS))

    if implementation == "alibaba-miil":
        loss = t * log_pos + anti * log_neg
        if GAMMA_NEG > 0 or GAMMA_POS > 0:
            if hard_labels:
                # Exact for t in {0,1}: strength-reduce both powers to VALU + select,
                # removing one exp and one log per element on the EUP-bound path.
                asym_w = jnp.where(t > 0.5,
                                   _pow_const(1.0 - xs_pos, GAMMA_POS),
                                   _pow_const(1.0 - xs_neg, GAMMA_NEG))
            else:
                # Soft labels: exponent mixes per element -> one exp/log pair.
                # base == 0 only where loss == 0, so the TINY clamp never changes results.
                base = 1.0 - xs_pos * t - xs_neg * anti
                expo = GAMMA_POS * t + GAMMA_NEG * anti
                asym_w = jnp.exp(expo * jnp.log(jnp.maximum(base, TINY)))
            loss = loss * asym_w
        return -loss

    # deep-psp
    loss_pos = t * log_pos
    loss_neg = anti * log_neg
    if GAMMA_NEG > 0 or GAMMA_POS > 0:
        loss_pos = loss_pos * _pow_const(1.0 - xs_pos, GAMMA_POS)   # ^1 -> identity
        loss_neg = loss_neg * _pow_const(xs_pos, GAMMA_NEG)         # ^4 -> 2 VALU muls
    return -loss_pos - loss_neg


def _rowsum(loss, acc_rows):
    """(chunk, lanes) -> (acc_rows, lanes) via vreg-aligned VALU adds (no cross-lane XLU)."""
    chunk = loss.shape[0]
    if chunk == acc_rows:
        return loss
    part = loss[0:acc_rows, :]
    for r in range(acc_rows, chunk, acc_rows):
        part = part + loss[r:r + acc_rows, :]
    return part


def _asl_sum_kernel(x_ref, t_ref, psum_ref, *, implementation, hard_labels,
                    chunk, acc_rows, valid_rows, needs_mask):
    """Per-tile (acc_rows, lanes) partial sum; no elementwise writeback."""
    tm, lanes = x_ref.shape
    n_chunks = tm // chunk
    psum_ref[...] = jnp.zeros(psum_ref.shape, psum_ref.dtype)

    if needs_mask:
        # Hoisted once per tile; per-chunk mask cost is one add + compare + select (VALU slack).
        row_iota = (lax.broadcasted_iota(jnp.int32, (chunk, lanes), 0)
                    + pl.program_id(0) * tm)

    def body(ci, carry):
        i = pl.multiple_of(ci * chunk, chunk)
        loss = _asl_elementwise(x_ref[pl.ds(i, chunk), :],
                                t_ref[pl.ds(i, chunk), :],
                                implementation, hard_labels)
        if needs_mask:
            loss = jnp.where((row_iota + i) < valid_rows, loss, 0.0)
        psum_ref[...] += _rowsum(loss, acc_rows)
        return carry

    lax.fori_loop(0, n_chunks, body, 0, unroll=True)


def _asl_elem_kernel(x_ref, t_ref, o_ref, *, implementation, hard_labels, chunk):
    """Elementwise loss tile (reduction='none'); OOB rows of the last block are dropped."""
    tm, _ = x_ref.shape
    n_chunks = tm // chunk

    def body(ci, carry):
        i = pl.multiple_of(ci * chunk, chunk)
        loss = _asl_elementwise(x_ref[pl.ds(i, chunk), :],
                                t_ref[pl.ds(i, chunk), :],
                                implementation, hard_labels)
        o_ref[pl.ds(i, chunk), :] = loss.astype(o_ref.dtype)
        return carry

    lax.fori_loop(0, n_chunks, body, 0, unroll=True)


def _plan_tiles(rows, lanes):
    """Pick (tile_rows, chunk_rows, num_tiles) for a (rows, lanes) elementwise problem."""
    if rows <= ROW_GRAIN:
        return rows, rows, 1                       # single whole-array block
    row_budget = max(ROW_GRAIN,
                     (TARGET_BLOCK_BYTES // (lanes * 4)) // ROW_GRAIN * ROW_GRAIN)
    chunk = min(CHUNK_ROWS, row_budget, _round_up(rows, ROW_GRAIN))
    chunks_total = -(-rows // chunk)
    max_chunks_per_tile = max(1, row_budget // chunk)
    num_tiles = -(-chunks_total // max_chunks_per_tile)
    if num_tiles == 1 and chunks_total >= 2:
        num_tiles = 2          # engage both v7x TensorCores via the "parallel" grid axis
    cpt = -(-chunks_total // num_tiles)
    num_tiles = -(-chunks_total // cpt)
    return cpt * chunk, chunk, num_tiles


def asymmetric_loss(inp, target, *, reduction="mean",
                    implementation="alibaba-miil", hard_labels=False):
    """Pallas-backed AsymmetricLoss forward.

    inp, target: (batch_size, n_classes) arrays (target may be any real dtype).
    Returns a scalar for reduction in {"mean", "sum"}, else the (B, C) elementwise loss.
    `hard_labels=True` is an opt-in fast path, exact only for targets in {0, 1}.
    """
    assert inp.shape == target.shape and inp.ndim == 2
    b, c = inp.shape
    implementation = implementation.lower()
    implementation = ("deep-psp" if implementation in ("deep-psp", "deeppsp")
                      else "alibaba-miil")
    reduction = reduction.lower()

    total = b * c
    if total % LANES == 0:
        rows, lanes = total // LANES, LANES        # lane-dense, copy-free reshape
        x2 = inp.reshape(rows, lanes)
        t2 = target.reshape(rows, lanes)
    else:
        rows, lanes = b, c                         # (B, C) blocks: no pad copy needed
        x2, t2 = inp, target

    tm, chunk, num_tiles = _plan_tiles(rows, lanes)
    needs_mask = (num_tiles * tm) != rows

    in_specs = [pl.BlockSpec((tm, lanes), lambda i: (i, 0)),
                pl.BlockSpec((tm, lanes), lambda i: (i, 0))]
    cparams = pltpu.CompilerParams(dimension_semantics=("parallel",),
                                   vmem_limit_bytes=VMEM_LIMIT_BYTES)

    if reduction in ("mean", "sum"):
        acc_rows = 8 if chunk % 8 == 0 else chunk
        kernel = functools.partial(
            _asl_sum_kernel, implementation=implementation, hard_labels=hard_labels,
            chunk=chunk, acc_rows=acc_rows, valid_rows=rows, needs_mask=needs_mask)
        psums = pl.pallas_call(
            kernel,
            out_shape=jax.ShapeDtypeStruct((num_tiles * acc_rows, lanes), jnp.float32),
            grid_spec=pltpu.PrefetchScalarGridSpec(
                num_scalar_prefetch=0,
                grid=(num_tiles,),
                in_specs=in_specs,
                out_specs=pl.BlockSpec((acc_rows, lanes), lambda i: (i, 0)),
            ),
            compiler_params=cparams,
        )(x2, t2)
        tot = jnp.sum(psums)
        if reduction == "mean":
            tot = tot / total
        return tot.astype(inp.dtype)

    # reduction == "none": elementwise loss written straight into a (rows, lanes) output
    # that reshapes (copy-free) back to (B, C); the overhang rows of the last block are
    # dropped by the partial writeback, so no output slice is needed.
    kernel = functools.partial(_asl_elem_kernel, implementation=implementation,
                               hard_labels=hard_labels, chunk=chunk)
    elem = pl.pallas_call(
        kernel,
        out_shape=jax.ShapeDtypeStruct((rows, lanes), inp.dtype),
        grid_spec=pltpu.PrefetchScalarGridSpec(
            num_scalar_prefetch=0,
            grid=(num_tiles,),
            in_specs=in_specs,
            out_specs=pl.BlockSpec((tm, lanes), lambda i: (i, 0)),
        ),
        compiler_params=cparams,
    )(x2, t2)
    return elem.reshape(b, c)


def _ref_elementwise(x, t, implementation):
    """Pure-JAX mirror of the PyTorch forward (elementwise negative loss)."""
    x = x.astype(jnp.float32)
    t = t.astype(jnp.float32)
    anti = 1.0 - t
    p = jax.nn.sigmoid(x)
    pn = 1.0 - p
    if PROB_MARGIN > 0:
        pn = jnp.minimum(pn + PROB_MARGIN, 1.0)
    lp = jnp.log(jnp.maximum(p, EPS))
    ln = jnp.log(jnp.maximum(pn, EPS))
    if implementation == "alibaba-miil":
        loss = t * lp + anti * ln
        w = jnp.power(1.0 - p * t - pn * anti, GAMMA_POS * t + GAMMA_NEG * anti)
        return -(loss * w)
    lpos = t * lp * jnp.power(1.0 - p, GAMMA_POS)
    lneg = anti * ln * jnp.power(p, GAMMA_NEG)
    return -lpos - lneg


def _check_case(key, shape, implementation, reductions, hard_labels=False, target_dtype=None):
    k1, k2 = jax.random.split(key)
    logits = jax.random.normal(k1, shape, dtype=jnp.float32) * 2.0
    targets = (jax.random.uniform(k2, shape) > 0.5).astype(jnp.float32)
    ref = _ref_elementwise(logits, targets, implementation)
    t_in = targets if target_dtype is None else targets.astype(target_dtype)
    for reduction in reductions:
        out = jax.block_until_ready(asymmetric_loss(
            logits, t_in, reduction=reduction,
            implementation=implementation, hard_labels=hard_labels))
        if reduction == "mean":
            expect = jnp.mean(ref)
        elif reduction == "sum":
            expect = jnp.sum(ref)
        else:
            expect = ref
        assert out.shape == expect.shape, (shape, implementation, reduction, out.shape)
        assert jnp.allclose(out, expect, atol=1e-5, rtol=5e-5), (
            shape, implementation, reduction, hard_labels)


if __name__ == "__main__":
    key = jax.random.PRNGKey(0)
    keys = jax.random.split(key, 8)

    # Canonical small shape (lane-dense path, single tiny tile): all impls x reductions.
    for impl in ("alibaba-miil", "deep-psp"):
        _check_case(keys[0], (8, 16), impl, ("mean", "sum", "none"))

    # Odd shape: falls back to (B, C) blocks with in-kernel tail masking / partial writeback.
    _check_case(keys[1], (37, 50), "alibaba-miil", ("sum", "none"))
    _check_case(keys[2], (37, 50), "deep-psp", ("mean",))

    # Multi-tile lane-dense path (2 "parallel" grid steps -> v7x megacore sharding).
    _check_case(keys[3], (1024, 128), "alibaba-miil", ("mean", "none"))
    _check_case(keys[4], (1024, 128), "deep-psp", ("mean",))

    # Hard-label fast path (exact for {0,1}), with a bf16 target stream.
    _check_case(keys[5], (1024, 128), "alibaba-miil", ("mean", "none"),
                hard_labels=True, target_dtype=jnp.bfloat16)

    print("KERNEL_OK")
</pallas_src>

<mosaic_0001>
module attributes {stable_mosaic.version = 11 : i64} {
  func.func @_asl_sum_kernel(%arg0: i32, %arg1: memref<1x128xf32, #tpu.memory_space<vmem>>, %arg2: memref<1x128xf32, #tpu.memory_space<vmem>>, %arg3: memref<1x128xf32, #tpu.memory_space<vmem>>) attributes {dimension_semantics = [#tpu.dimension_semantics<parallel>], iteration_bounds = array<i64: 1>, scalar_prefetch = 0 : i64, scratch_operands = 0 : i64, tpu.core_type = #tpu.core_type<tc>, window_params = [{transform_indices = @transform_0, window_bounds = array<i64: 1, 128>}, {transform_indices = @transform_1, window_bounds = array<i64: 1, 128>}, {transform_indices = @transform_2, window_bounds = array<i64: 1, 128>}]} {
    %cst = arith.constant 0.000000e+00 : f32
    %0 = vector.broadcast %cst : f32 to vector<1x128xf32>
    %c0 = arith.constant 0 : index
    %c0_0 = arith.constant 0 : index
    %1 = vector.load %arg3[%c0, %c0_0] : memref<1x128xf32, #tpu.memory_space<vmem>>, vector<1x128xf32>
    tpu.vector_store %arg3[%c0, %c0_0], %0 {strides = array<i32>} : memref<1x128xf32, #tpu.memory_space<vmem>>, vector<1x128xf32>,
    %c0_i32 = arith.constant 0 : i32
    %c1_i32 = arith.constant 1 : i32
    %2 = arith.muli %c0_i32, %c1_i32 : i32
    %3 = tpu.assume_multiple %2, 1 : i32
    %4 = arith.index_cast %3 : i32 to index
    %c0_1 = arith.constant 0 : index
    %5 = vector.load %arg1[%4, %c0_1] : memref<1x128xf32, #tpu.memory_space<vmem>>, vector<1x128xf32>
    %6 = arith.index_cast %3 : i32 to index
    %c0_2 = arith.constant 0 : index
    %7 = vector.load %arg2[%6, %c0_2] : memref<1x128xf32, #tpu.memory_space<vmem>>, vector<1x128xf32>
    %cst_3 = arith.constant 1.000000e+00 : f32
    %8 = vector.broadcast %cst_3 : f32 to vector<1x128xf32>
    %9 = arith.subf %8, %7 : vector<1x128xf32>
    %cst_4 = arith.constant 0.000000e+00 : f32
    %10 = vector.broadcast %cst_4 : f32 to vector<1x128xf32>
    %11 = arith.subf %10, %5 : vector<1x128xf32>
    %12 = math.exp %11 : vector<1x128xf32>
    %cst_5 = arith.constant 1.000000e+00 : f32
    %13 = vector.broadcast %cst_5 : f32 to vector<1x128xf32>
    %14 = arith.addf %13, %12 : vector<1x128xf32>
    %cst_6 = arith.constant 1.000000e+00 : f32
    %15 = vector.broadcast %cst_6 : f32 to vector<1x128xf32>
    %16 = arith.divf %15, %14 : vector<1x128xf32>
    %cst_7 = arith.constant 1.000000e+00 : f32
    %17 = vector.broadcast %cst_7 : f32 to vector<1x128xf32>
    %18 = arith.addf %17, %12 : vector<1x128xf32>
    %19 = math.log %18 : vector<1x128xf32>
    %cst_8 = arith.constant 0.000000e+00 : f32
    %20 = vector.broadcast %cst_8 : f32 to vector<1x128xf32>
    %21 = arith.subf %20, %19 : vector<1x128xf32>
    %cst_9 = arith.constant -18.420681 : f32
    %22 = vector.broadcast %cst_9 : f32 to vector<1x128xf32>
    %23 = arith.maximumf %21, %22 : vector<1x128xf32>
    %cst_10 = arith.constant 1.000000e+00 : f32
    %24 = vector.broadcast %cst_10 : f32 to vector<1x128xf32>
    %25 = arith.subf %24, %16 : vector<1x128xf32>
    %cst_11 = arith.constant 5.000000e-02 : f32
    %26 = vector.broadcast %cst_11 : f32 to vector<1x128xf32>
    %27 = arith.addf %25, %26 : vector<1x128xf32>
    %cst_12 = arith.constant 1.000000e+00 : f32
    %28 = vector.broadcast %cst_12 : f32 to vector<1x128xf32>
    %29 = arith.minimumf %27, %28 : vector<1x128xf32>
    %cst_13 = arith.constant 9.99999993E-9 : f32
    %30 = vector.broadcast %cst_13 : f32 to vector<1x128xf32>
    %31 = arith.maximumf %29, %30 : vector<1x128xf32>
    %32 = math.log %31 : vector<1x128xf32>
    %33 = arith.mulf %7, %23 : vector<1x128xf32>
    %34 = arith.mulf %9, %32 : vector<1x128xf32>
    %35 = arith.addf %33, %34 : vector<1x128xf32>
    %36 = arith.mulf %16, %7 : vector<1x128xf32>
    %cst_14 = arith.constant 1.000000e+00 : f32
    %37 = vector.broadcast %cst_14 : f32 to vector<1x128xf32>
    %38 = arith.subf %37, %36 : vector<1x128xf32>
    %39 = arith.mulf %29, %9 : vector<1x128xf32>
    %40 = arith.subf %38, %39 : vector<1x128xf32>
    %cst_15 = arith.constant 1.000000e+00 : f32
    %41 = vector.broadcast %cst_15 : f32 to vector<1x128xf32>
    %42 = arith.mulf %41, %7 : vector<1x128xf32>
    %cst_16 = arith.constant 4.000000e+00 : f32
    %43 = vector.broadcast %cst_16 : f32 to vector<1x128xf32>
    %44 = arith.mulf %43, %9 : vector<1x128xf32>
    %45 = arith.addf %42, %44 : vector<1x128xf32>
    %cst_17 = arith.constant 1.000000e-30 : f32
    %46 = vector.broadcast %cst_17 : f32 to vector<1x128xf32>
    %47 = arith.maximumf %40, %46 : vector<1x128xf32>
    %48 = math.log %47 : vector<1x128xf32>
    %49 = arith.mulf %45, %48 : vector<1x128xf32>
    %50 = math.exp %49 : vector<1x128xf32>
    %51 = arith.mulf %35, %50 : vector<1x128xf32>
    %cst_18 = arith.constant 0.000000e+00 : f32
    %52 = vector.broadcast %cst_18 : f32 to vector<1x128xf32>
    %53 = arith.subf %52, %51 : vector<1x128xf32>
    %c0_19 = arith.constant 0 : index
    %c0_20 = arith.constant 0 : index
    %54 = vector.load %arg3[%c0_19, %c0_20] : memref<1x128xf32, #tpu.memory_space<vmem>>, vector<1x128xf32>
    %55 = arith.addf %54, %53 : vector<1x128xf32>
    %c0_21 = arith.constant 0 : index
    %c0_22 = arith.constant 0 : index
    %56 = vector.load %arg3[%c0_21, %c0_22] : memref<1x128xf32, #tpu.memory_space<vmem>>, vector<1x128xf32>
    tpu.vector_store %arg3[%c0_21, %c0_22], %55 {strides = array<i32>} : memref<1x128xf32, #tpu.memory_space<vmem>>, vector<1x128xf32>,
    %c1_i32_23 = arith.constant 1 : i32
    return
  }
  func.func @transform_0(%arg0: i32) -> (i32, i32) {
    %c0_i32 = arith.constant 0 : i32
    %c0_i32_0 = arith.constant 0 : i32
    return %arg0, %c0_i32 : i32, i32
  }
  func.func @transform_1(%arg0: i32) -> (i32, i32) {
    %c0_i32 = arith.constant 0 : i32
    %c0_i32_0 = arith.constant 0 : i32
    return %arg0, %c0_i32 : i32, i32
  }
  func.func @transform_2(%arg0: i32) -> (i32, i32) {
    %c0_i32 = arith.constant 0 : i32
    %c0_i32_0 = arith.constant 0 : i32
    return %arg0, %c0_i32 : i32, i32
  }
}

</mosaic_0001>

<llo_original>
// kernel: tpu_custom_call.1
$region0: #{tpu_custom_call.1}
  #allocation0 [shape = 'u32[]', space=smem, size = 0x4, offset = 0x4, fixed_abs, tag = 'smem constant byte address 0x4 - core index']
  #allocation1 [shape = 'u32[72,128]{1,0:T(1,128)}', space=vmem, size = 0x9000, scoped, tag = 'internal scratch']
  %s0 = inlined_call_operand.hbm [shape: f32[1,128], index: 0, kind: input, shape index: {}]
  %s1 = inlined_call_operand.hbm [shape: f32[1,128], index: 1, kind: input, shape index: {}]
  %s2 = inlined_call_operand.hbm [shape: f32[1,128], index: 2, kind: output, shape index: {}]
  %s3 = sld [smem:[#allocation0]]
  $region26: #{tpu_custom_call.1} parent=0
    _
  %s5 = ssub.s32 1, %s3
  %s6 = scalar_select 0, %s5, %s3
  $region1: #{tpu_custom_call.1} parent=0
    #allocation2 [shape = 'u8[512]{0}', space=vmem, size = 0x400, scoped, tag = 'input window, operand 0, single buffered']
    #allocation3 [shape = 's32[1]{0}', space=sflag, size = 0x4, scoped, tag = 'scoped memory for tpu_custom_call.1']
    #allocation4 [shape = 's32[1]{0}', space=sflag, size = 0x4, scoped, tag = 'scoped memory for tpu_custom_call.1']
    #allocation5 [shape = 'u8[512]{0}', space=vmem, size = 0x400, scoped, tag = 'input window, operand 1, single buffered']
    #allocation6 [shape = 's32[1]{0}', space=sflag, size = 0x4, scoped, tag = 'scoped memory for tpu_custom_call.1']
    #allocation7 [shape = 'u8[512]{0}', space=vmem, size = 0x400, scoped, tag = 'output window, operand 0, single buffered']
    %7 = vsyncpa [#allocation3], 0
    %8 = vsyncpa [#allocation6], 0
    %9 = vsyncpa [#allocation4], 0
    // Predicated region
    $region2: #{tpu_custom_call.1} parent=1 // pred_check
      _
    $region3: #{tpu_custom_call.1} parent=1 // pred_check_branch
      %11 = sbr.rel (0) target = $region5
    $region4: #{tpu_custom_call.1} parent=1 // pred_region
      %13 = vsyncadd [#allocation3], 0
      %s15 = sshll.u32 %s0, 4
      %s16 = int_to_ptr.hbm [resolvable:$true] %s15
      %s17 = sshll.u32 [#allocation2], 4
      %s18 = int_to_ptr.vmem [resolvable:$true] %s17
      %20 = dma.hbm_to_vmem [thread:$0]  %s16, 16, %s18, [#allocation3]
    $region5: #{tpu_custom_call.1} parent=1 // pred_fallthru
      _
    // Predicated region
    $region6: #{tpu_custom_call.1} parent=1 // pred_check
      _
    $region7: #{tpu_custom_call.1} parent=1 // pred_check_branch
      %22 = sbr.rel (0) target = $region9
    $region8: #{tpu_custom_call.1} parent=1 // pred_region
      %24 = vsyncadd [#allocation6], 0
      %s26 = sshll.u32 %s1, 4
      %s27 = int_to_ptr.hbm [resolvable:$true] %s26
      %s28 = sshll.u32 [#allocation5], 4
      %s29 = int_to_ptr.vmem [resolvable:$true] %s28
      %31 = dma.hbm_to_vmem [thread:$0]  %s27, 16, %s29, [#allocation6]
    $region9: #{tpu_custom_call.1} parent=1 // pred_fallthru
      _
    // Predicated region
    $region10: #{tpu_custom_call.1} parent=1 // pred_check
      _
    $region11: #{tpu_custom_call.1} parent=1 // pred_check_branch
      %33 = sbr.rel (0) target = $region13
    $region12: #{tpu_custom_call.1} parent=1 // pred_region
      %35 = dma.done [#allocation3], 16
    $region13: #{tpu_custom_call.1} parent=1 // pred_fallthru
      _
    // Predicated region
    $region14: #{tpu_custom_call.1} parent=1 // pred_check
      _
    $region15: #{tpu_custom_call.1} parent=1 // pred_check_branch
      %37 = sbr.rel (0) target = $region17
    $region16: #{tpu_custom_call.1} parent=1 // pred_region
      %39 = dma.done [#allocation6], 16
    $region17: #{tpu_custom_call.1} parent=1 // pred_fallthru
      _
    %40 = vst [vmem:[#allocation7] sm:$0x1] 0.0
    %v41 = vld [vmem:[#allocation2] sm:$0x1]
    %v42 = vld [vmem:[#allocation5] sm:$0x1]
    %v43 = vsub.f32 1.0, %v42
    %v44 = vsub.f32 0.0, %v41
    %v45 = vmul.f32 %v44, 1.442695
    %v46 = vpow.pop %v45
    %v47 = vadd.f32 %v46, 1.0
    %v48 = vrcp.pop %v47
    %v49 = vmul.f32 %v47, %v48
    %v50 = vsub.f32 1.0, %v49
    %v51 = vmul.f32 %v48, %v50
    %v52 = vadd.f32 %v48, %v51
    %vm53 = vweird.f32 %v47
    %vm54 = vweird.f32 %v48
    %vm55 = vmor %vm53, %vm54
    %v56 = vsel %vm55, %v48, %v52
    %v57 = vand.u32 2147483647, %v47
    %vm58 = vcmp.eq.f32.partialorder %v57, 8.507059e+37
    %v59 = vand.u32 %v47, 2147483648
    %v60 = vor.u32 1.1754944e-38, %v59
    %v61 = vsel %vm58, %v60, %v56
    %v62 = vmul.f32 1.0, %v61
    %v63 = vlog2.pop %v47
    %v64 = vmul.f32 %v63, 0.6931472
    %v65 = vsub.f32 0.0, %v64
    %v66 = vmax.f32 %v65, -18.420681
    %v67 = vsub.f32 1.0, %v62
    %v68 = vadd.f32 %v67, 0.05
    %v69 = vmin.f32 %v68, 1.0
    %v70 = vmax.f32 %v69, 1e-08
    %v71 = vlog2.pop %v70
    %v72 = vmul.f32 %v71, 0.6931472
    %v73 = vmul.f32 %v42, %v66
    %v74 = vmul.f32 %v43, %v72
    %v75 = vadd.f32 %v73, %v74
    %v76 = vmul.f32 %v62, %v42
    %v77 = vsub.f32 1.0, %v76
    %v78 = vmul.f32 %v69, %v43
    %v79 = vsub.f32 %v77, %v78
    %v80 = vmul.f32 %v43, 4.0
    %v81 = vadd.f32 %v42, %v80
    %v82 = vmax.f32 %v79, 1e-30
    %v83 = vlog2.pop %v82
    %v84 = vmul.f32 %v83, 0.6931472
    %v85 = vmul.f32 %v81, %v84
    %v86 = vmul.f32 %v85, 1.442695
    %v87 = vpow.pop %v86
    %v88 = vmul.f32 %v75, %v87
    %v89 = vsub.f32 0.0, %v88
    %v90 = vld [vmem:[#allocation7] sm:$0x1]
    %v91 = vadd.f32 %v90, %v89
    %92 = vst [vmem:[#allocation7] sm:$0x1] %v91
    // Predicated region
    $region18: #{tpu_custom_call.1} parent=1 // pred_check
      _
    $region19: #{tpu_custom_call.1} parent=1 // pred_check_branch
      %94 = sbr.rel (0) target = $region21
    $region20: #{tpu_custom_call.1} parent=1 // pred_region
      %96 = vsyncadd [#allocation4], 0
      %s98 = sshll.u32 [#allocation7], 4
      %s99 = int_to_ptr.vmem [resolvable:$true] %s98
      %s100 = sshll.u32 %s2, 4
      %s101 = int_to_ptr.hbm [resolvable:$true] %s100
      %103 = dma.vmem_to_hbm [thread:$0]  %s99, 16, %s101, [#allocation4]
    $region21: #{tpu_custom_call.1} parent=1 // pred_fallthru
      _
    // Predicated region
    $region22: #{tpu_custom_call.1} parent=1 // pred_check
      _
    $region23: #{tpu_custom_call.1} parent=1 // pred_check_branch
      %105 = sbr.rel (0) target = $region25
    $region24: #{tpu_custom_call.1} parent=1 // pred_region
      %107 = dma.done [#allocation4], 16
    $region25: #{tpu_custom_call.1} parent=1 // pred_fallthru
      _
    %108 = vsyncpa [#allocation3], 1
    %109 = vsyncpa [#allocation6], 1
    %110 = vsyncpa [#allocation4], 1

</llo_original>
